<compile_context>
chip_gen: v7x
topology: tpu7x:2x2x1
jax: 0.10.0
libtpu: 0.0.40
codegen_flags: <defaults>
</compile_context>

<pallas_src>
import jax
import jax.numpy as jnp
from jax.experimental import pallas as pl
from jax.experimental.pallas import tpu as pltpu

CHROMA_WEIGHT = 0.05
HIST_WEIGHT = 0.02
F_CHROM = 50            # extract_chrominance_features output size
F_HIST = 32 * 6 + 24    # compute_color_histograms output size (bins=32)


# ----------------------------- fused Pallas kernel -------------------------- #

def _fused_loss_kernel(labels_row_ref, labels_col_ref, logits_t_ref,
                       chrom_ref, hist_ref, out_ref):
    """Writes [cls_loss, chrom_loss, hist_loss, total_loss] into out_ref (4,) SMEM.

    Matches ChrominanceLoss.forward:
      cls_loss   = CrossEntropyLoss(logits, labels)            (mean over batch)
      chrom_loss = -MSE(mean(chrom[labels==0]), mean(chrom[labels!=0]))
      hist_loss  = -MSE(mean(hist [labels==0]), mean(hist [labels!=0]))
      both gated on: at least one label==0 AND at least one label==1 (the torch
      code buckets 'real' = everything not in fake_indices but gates on ==1)
      total = cls + 0.05 * chrom + 0.02 * hist
    """
    labels_row = labels_row_ref[...]                          # (1, B) int32, lane-dense
    labels_col = labels_col_ref[...]                          # (B, 1) int32, sublane-dense
    logits_t = logits_t_ref[...].astype(jnp.float32)          # (C, B)
    chrom = chrom_ref[...].astype(jnp.float32)                # (B, F_CHROM)
    hist = hist_ref[...].astype(jnp.float32)                  # (B, F_HIST)

    C, B = logits_t.shape

    # ---------------- mean cross entropy (lane-dense over B) ----------------
    # max over classes: unrolled maximum of C sublane rows (C is tiny & static).
    m = logits_t[0:1, :]                                      # (1, B)
    for c in range(1, C):
        m = jnp.maximum(m, logits_t[c:c + 1, :])
    z = jnp.zeros_like(m)
    for c in range(C):
        z = z + jnp.exp(logits_t[c:c + 1, :] - m)             # (1, B)
    lse = m + jnp.log(z)                                      # (1, B)
    sum_lse = jnp.sum(lse)

    # sum_i logits[labels[i], i] via a pure-VPU masked select-sum (no MXU).
    class_iota = jax.lax.broadcasted_iota(jnp.int32, (C, B), 0)   # (C, B)
    picked = jnp.where(class_iota == labels_row, logits_t, 0.0)   # (C, B)
    sum_picked = jnp.sum(picked)
    cls_loss = (sum_lse - sum_picked) / B

    # ------------- masked class means (fake = label==0, real = else) --------
    fake_col = (labels_col == 0).astype(jnp.float32)          # (B, 1)
    n_fake = jnp.sum(fake_col)
    n_real = jnp.float32(B) - n_fake                          # 'real' bucket = labels != 0
    n_lbl1 = jnp.sum((labels_row == 1).astype(jnp.float32))   # torch validity gate uses ==1
    valid = jnp.logical_and(n_fake > 0.0, n_lbl1 > 0.0)
    inv_fake = 1.0 / jnp.maximum(n_fake, 1.0)
    inv_real = 1.0 / jnp.maximum(n_real, 1.0)

    def neg_masked_mse(feats):
        # fake_sum via VPU multiply + sublane reduce; real_sum by subtraction.
        col_sum = jnp.sum(feats, axis=0, keepdims=True)               # (1, F)
        fake_sum = jnp.sum(feats * fake_col, axis=0, keepdims=True)   # (1, F)
        real_sum = col_sum - fake_sum
        diff = fake_sum * inv_fake - real_sum * inv_real
        return -jnp.mean(diff * diff)

    chrom_loss = jnp.where(valid, neg_masked_mse(chrom), 0.0)
    hist_loss = jnp.where(valid, neg_masked_mse(hist), 0.0)

    total = cls_loss + CHROMA_WEIGHT * chrom_loss + HIST_WEIGHT * hist_loss

    out_ref[0] = cls_loss
    out_ref[1] = chrom_loss
    out_ref[2] = hist_loss
    out_ref[3] = total


# ------------------------------- wrapper ----------------------------------- #

@jax.jit
def chrominance_loss(outputs, labels, images, chrom_feats, hist_feats):
    """Forward pass of ChrominanceLoss(chroma_weight=0.05, hist_weight=0.02)."""
    del images  # consumed only by the untranslatable cv2 feature extractors
    labels_i32 = labels.astype(jnp.int32)
    labels_row = labels_i32.reshape(1, -1)                 # (1, B) lane-dense
    labels_col = labels_i32.reshape(-1, 1)                 # (B, 1) sublane-dense
    logits_t = outputs.astype(jnp.float32).T               # (C, B) batch lane-dense

    out = pl.pallas_call(
        _fused_loss_kernel,
        out_shape=jax.ShapeDtypeStruct((4,), jnp.float32),
        in_specs=[
            pl.BlockSpec(memory_space=pltpu.MemorySpace.VMEM),  # labels_row (1, B)
            pl.BlockSpec(memory_space=pltpu.MemorySpace.VMEM),  # labels_col (B, 1)
            pl.BlockSpec(memory_space=pltpu.MemorySpace.VMEM),  # logits_T   (C, B)
            pl.BlockSpec(memory_space=pltpu.MemorySpace.VMEM),  # chrom      (B, 50)
            pl.BlockSpec(memory_space=pltpu.MemorySpace.VMEM),  # hist       (B, 216)
        ],
        out_specs=pl.BlockSpec(memory_space=pltpu.MemorySpace.SMEM),
    )(labels_row, labels_col, logits_t, chrom_feats, hist_feats)

    cls_loss = out[0]
    chrom_loss = out[1]
    hist_loss = out[2]
    total = out[3]
    return total, {
        "cls_loss": cls_loss,
        "chrom_loss": chrom_loss,
        "hist_loss": hist_loss,
        "total_loss": total,
    }


# --------------------------------- main ------------------------------------ #

if __name__ == "__main__":
    key = jax.random.PRNGKey(0)
    k_logits, k_img, k_chrom, k_hist = jax.random.split(key, 4)

    B, C, H, W = 2, 2, 16, 16
    outputs = jax.random.normal(k_logits, (B, C), dtype=jnp.float32)       # logits
    labels = jnp.array([0, 1], dtype=jnp.int32)                            # fake / real
    images = jax.random.uniform(k_img, (B, 3, H, W), dtype=jnp.float32)    # NCHW
    # Deterministic stand-ins for the cv2-derived per-image features:
    chrom_feats = jax.random.normal(k_chrom, (B, F_CHROM), dtype=jnp.float32)
    hist_feats = jax.random.normal(k_hist, (B, F_HIST), dtype=jnp.float32)

    total, parts = chrominance_loss(outputs, labels, images, chrom_feats, hist_feats)
    total = jax.block_until_ready(total)
    parts = jax.tree_util.tree_map(jax.block_until_ready, parts)

    # sanity: all components finite
    assert bool(jnp.isfinite(total))
    assert all(bool(jnp.isfinite(v)) for v in parts.values())
    print("KERNEL_OK")
</pallas_src>

<mosaic_0001>
module attributes {stable_mosaic.version = 11 : i64} {
  func.func @_fused_loss_kernel(%arg0: memref<1x2xi32, #tpu.memory_space<vmem>>, %arg1: memref<2x1xi32, #tpu.memory_space<vmem>>, %arg2: memref<2x2xf32, #tpu.memory_space<vmem>>, %arg3: memref<2x50xf32, #tpu.memory_space<vmem>>, %arg4: memref<2x216xf32, #tpu.memory_space<vmem>>, %arg5: memref<4xf32, #tpu.memory_space<smem>>) attributes {dimension_semantics = [], scalar_prefetch = 0 : i64, scratch_operands = 0 : i64, tpu.core_type = #tpu.core_type<tc>} {
    %c0 = arith.constant 0 : index
    %c0_0 = arith.constant 0 : index
    %0 = vector.load %arg0[%c0, %c0_0] : memref<1x2xi32, #tpu.memory_space<vmem>>, vector<1x2xi32>
    %c0_1 = arith.constant 0 : index
    %c0_2 = arith.constant 0 : index
    %1 = vector.load %arg1[%c0_1, %c0_2] : memref<2x1xi32, #tpu.memory_space<vmem>>, vector<2x1xi32>
    %c0_3 = arith.constant 0 : index
    %c0_4 = arith.constant 0 : index
    %2 = vector.load %arg2[%c0_3, %c0_4] : memref<2x2xf32, #tpu.memory_space<vmem>>, vector<2x2xf32>
    %c0_5 = arith.constant 0 : index
    %c0_6 = arith.constant 0 : index
    %3 = vector.load %arg3[%c0_5, %c0_6] : memref<2x50xf32, #tpu.memory_space<vmem>>, vector<2x50xf32>
    %c0_7 = arith.constant 0 : index
    %c0_8 = arith.constant 0 : index
    %4 = vector.load %arg4[%c0_7, %c0_8] : memref<2x216xf32, #tpu.memory_space<vmem>>, vector<2x216xf32>
    %5 = vector.extract_strided_slice %2 {offsets = [0, 0], sizes = [1, 2], strides = [1, 1]} : vector<2x2xf32> to vector<1x2xf32>
    %6 = vector.extract_strided_slice %2 {offsets = [1, 0], sizes = [1, 2], strides = [1, 1]} : vector<2x2xf32> to vector<1x2xf32>
    %7 = arith.maximumf %5, %6 : vector<1x2xf32>
    %cst = arith.constant 0.000000e+00 : f32
    %8 = vector.broadcast %cst : f32 to vector<1x2xf32>
    %9 = vector.extract_strided_slice %2 {offsets = [0, 0], sizes = [1, 2], strides = [1, 1]} : vector<2x2xf32> to vector<1x2xf32>
    %10 = arith.subf %9, %7 : vector<1x2xf32>
    %11 = math.exp %10 : vector<1x2xf32>
    %12 = arith.addf %8, %11 : vector<1x2xf32>
    %13 = vector.extract_strided_slice %2 {offsets = [1, 0], sizes = [1, 2], strides = [1, 1]} : vector<2x2xf32> to vector<1x2xf32>
    %14 = arith.subf %13, %7 : vector<1x2xf32>
    %15 = math.exp %14 : vector<1x2xf32>
    %16 = arith.addf %12, %15 : vector<1x2xf32>
    %17 = math.log %16 : vector<1x2xf32>
    %18 = arith.addf %7, %17 : vector<1x2xf32>
    %19 = vector.shape_cast %18 : vector<1x2xf32> to vector<1x1x2xf32>
    %cst_9 = arith.constant dense<0.000000e+00> : vector<1xf32>
    %20 = vector.multi_reduction <add>, %19, %cst_9 [1, 2] : vector<1x1x2xf32> to vector<1xf32>
    %21 = vector.shape_cast %20 : vector<1xf32> to vector<1x1x1xf32>
    %22 = vector.extract %21[0, 0, 0] : f32 from vector<1x1x1xf32>
    %23 = tpu.iota {dimensions = array<i32: 0>} : vector<2x2xi32>
    %24 = vector.broadcast %0 : vector<1x2xi32> to vector<2x2xi32>
    %25 = arith.cmpi eq, %23, %24 : vector<2x2xi32>
    %cst_10 = arith.constant 0.000000e+00 : f32
    %26 = vector.broadcast %cst_10 : f32 to vector<2x2xf32>
    %27 = arith.select %25, %2, %26 : vector<2x2xi1>, vector<2x2xf32>
    %28 = vector.shape_cast %27 : vector<2x2xf32> to vector<1x2x2xf32>
    %cst_11 = arith.constant dense<0.000000e+00> : vector<1xf32>
    %29 = vector.multi_reduction <add>, %28, %cst_11 [1, 2] : vector<1x2x2xf32> to vector<1xf32>
    %30 = vector.shape_cast %29 : vector<1xf32> to vector<1x1x1xf32>
    %31 = vector.extract %30[0, 0, 0] : f32 from vector<1x1x1xf32>
    %32 = arith.subf %22, %31 : f32
    %cst_12 = arith.constant 2.000000e+00 : f32
    %33 = arith.divf %32, %cst_12 : f32
    %c0_i32 = arith.constant 0 : i32
    %34 = vector.broadcast %c0_i32 : i32 to vector<2x1xi32>
    %35 = arith.cmpi eq, %1, %34 : vector<2x1xi32>
    %36 = arith.extui %35 : vector<2x1xi1> to vector<2x1xi32>
    %37 = arith.sitofp %36 : vector<2x1xi32> to vector<2x1xf32>
    %38 = vector.shape_cast %37 : vector<2x1xf32> to vector<1x2x1xf32>
    %cst_13 = arith.constant dense<0.000000e+00> : vector<1xf32>
    %39 = vector.multi_reduction <add>, %38, %cst_13 [1, 2] : vector<1x2x1xf32> to vector<1xf32>
    %40 = vector.shape_cast %39 : vector<1xf32> to vector<1x1x1xf32>
    %41 = vector.extract %40[0, 0, 0] : f32 from vector<1x1x1xf32>
    %cst_14 = arith.constant 2.000000e+00 : f32
    %42 = arith.subf %cst_14, %41 : f32
    %c1_i32 = arith.constant 1 : i32
    %43 = vector.broadcast %c1_i32 : i32 to vector<1x2xi32>
    %44 = arith.cmpi eq, %0, %43 : vector<1x2xi32>
    %45 = arith.extui %44 : vector<1x2xi1> to vector<1x2xi32>
    %46 = arith.sitofp %45 : vector<1x2xi32> to vector<1x2xf32>
    %47 = vector.shape_cast %46 : vector<1x2xf32> to vector<1x1x2xf32>
    %cst_15 = arith.constant dense<0.000000e+00> : vector<1xf32>
    %48 = vector.multi_reduction <add>, %47, %cst_15 [1, 2] : vector<1x1x2xf32> to vector<1xf32>
    %49 = vector.shape_cast %48 : vector<1xf32> to vector<1x1x1xf32>
    %50 = vector.extract %49[0, 0, 0] : f32 from vector<1x1x1xf32>
    %cst_16 = arith.constant 0.000000e+00 : f32
    %51 = arith.cmpf ogt, %41, %cst_16 : f32
    %cst_17 = arith.constant 0.000000e+00 : f32
    %52 = arith.cmpf ogt, %50, %cst_17 : f32
    %53 = arith.andi %51, %52 : i1
    %cst_18 = arith.constant 1.000000e+00 : f32
    %54 = arith.maximumf %41, %cst_18 : f32
    %cst_19 = arith.constant 1.000000e+00 : f32
    %55 = arith.divf %cst_19, %54 : f32
    %cst_20 = arith.constant 1.000000e+00 : f32
    %56 = arith.maximumf %42, %cst_20 : f32
    %cst_21 = arith.constant 1.000000e+00 : f32
    %57 = arith.divf %cst_21, %56 : f32
    %cst_22 = arith.constant dense<0.000000e+00> : vector<50xf32>
    %58 = vector.multi_reduction <add>, %3, %cst_22 [0] : vector<2x50xf32> to vector<50xf32>
    %59 = vector.shape_cast %58 : vector<50xf32> to vector<1x50xf32>
    %60 = vector.broadcast %37 : vector<2x1xf32> to vector<2x50xf32>
    %61 = arith.mulf %3, %60 : vector<2x50xf32>
    %cst_23 = arith.constant dense<0.000000e+00> : vector<50xf32>
    %62 = vector.multi_reduction <add>, %61, %cst_23 [0] : vector<2x50xf32> to vector<50xf32>
    %63 = vector.shape_cast %62 : vector<50xf32> to vector<1x50xf32>
    %64 = arith.subf %59, %63 : vector<1x50xf32>
    %65 = vector.broadcast %55 : f32 to vector<1x50xf32>
    %66 = arith.mulf %63, %65 : vector<1x50xf32>
    %67 = vector.broadcast %57 : f32 to vector<1x50xf32>
    %68 = arith.mulf %64, %67 : vector<1x50xf32>
    %69 = arith.subf %66, %68 : vector<1x50xf32>
    %70 = arith.mulf %69, %69 : vector<1x50xf32>
    %71 = vector.shape_cast %70 : vector<1x50xf32> to vector<1x1x50xf32>
    %cst_24 = arith.constant dense<0.000000e+00> : vector<1xf32>
    %72 = vector.multi_reduction <add>, %71, %cst_24 [1, 2] : vector<1x1x50xf32> to vector<1xf32>
    %73 = vector.shape_cast %72 : vector<1xf32> to vector<1x1x1xf32>
    %74 = vector.extract %73[0, 0, 0] : f32 from vector<1x1x1xf32>
    %cst_25 = arith.constant 5.000000e+01 : f32
    %75 = arith.divf %74, %cst_25 : f32
    %cst_26 = arith.constant 0.000000e+00 : f32
    %76 = arith.subf %cst_26, %75 : f32
    %cst_27 = arith.constant 0.000000e+00 : f32
    %77 = arith.select %53, %76, %cst_27 : f32
    %cst_28 = arith.constant dense<0.000000e+00> : vector<216xf32>
    %78 = vector.multi_reduction <add>, %4, %cst_28 [0] : vector<2x216xf32> to vector<216xf32>
    %79 = vector.shape_cast %78 : vector<216xf32> to vector<1x216xf32>
    %80 = vector.broadcast %37 : vector<2x1xf32> to vector<2x216xf32>
    %81 = arith.mulf %4, %80 : vector<2x216xf32>
    %cst_29 = arith.constant dense<0.000000e+00> : vector<216xf32>
    %82 = vector.multi_reduction <add>, %81, %cst_29 [0] : vector<2x216xf32> to vector<216xf32>
    %83 = vector.shape_cast %82 : vector<216xf32> to vector<1x216xf32>
    %84 = arith.subf %79, %83 : vector<1x216xf32>
    %85 = vector.broadcast %55 : f32 to vector<1x216xf32>
    %86 = arith.mulf %83, %85 : vector<1x216xf32>
    %87 = vector.broadcast %57 : f32 to vector<1x216xf32>
    %88 = arith.mulf %84, %87 : vector<1x216xf32>
    %89 = arith.subf %86, %88 : vector<1x216xf32>
    %90 = arith.mulf %89, %89 : vector<1x216xf32>
    %91 = vector.shape_cast %90 : vector<1x216xf32> to vector<1x1x216xf32>
    %cst_30 = arith.constant dense<0.000000e+00> : vector<1xf32>
    %92 = vector.multi_reduction <add>, %91, %cst_30 [1, 2] : vector<1x1x216xf32> to vector<1xf32>
    %93 = vector.shape_cast %92 : vector<1xf32> to vector<1x1x1xf32>
    %94 = vector.extract %93[0, 0, 0] : f32 from vector<1x1x1xf32>
    %cst_31 = arith.constant 2.160000e+02 : f32
    %95 = arith.divf %94, %cst_31 : f32
    %cst_32 = arith.constant 0.000000e+00 : f32
    %96 = arith.subf %cst_32, %95 : f32
    %cst_33 = arith.constant 0.000000e+00 : f32
    %97 = arith.select %53, %96, %cst_33 : f32
    %cst_34 = arith.constant 5.000000e-02 : f32
    %98 = arith.mulf %cst_34, %77 : f32
    %99 = arith.addf %33, %98 : f32
    %cst_35 = arith.constant 2.000000e-02 : f32
    %100 = arith.mulf %cst_35, %97 : f32
    %101 = arith.addf %99, %100 : f32
    %c0_36 = arith.constant 0 : index
    %102 = memref.load %arg5[%c0_36] : memref<4xf32, #tpu.memory_space<smem>>
    memref.store %33, %arg5[%c0_36] : memref<4xf32, #tpu.memory_space<smem>>
    %c1 = arith.constant 1 : index
    %103 = memref.load %arg5[%c1] : memref<4xf32, #tpu.memory_space<smem>>
    memref.store %77, %arg5[%c1] : memref<4xf32, #tpu.memory_space<smem>>
    %c2 = arith.constant 2 : index
    %104 = memref.load %arg5[%c2] : memref<4xf32, #tpu.memory_space<smem>>
    memref.store %97, %arg5[%c2] : memref<4xf32, #tpu.memory_space<smem>>
    %c3 = arith.constant 3 : index
    %105 = memref.load %arg5[%c3] : memref<4xf32, #tpu.memory_space<smem>>
    memref.store %101, %arg5[%c3] : memref<4xf32, #tpu.memory_space<smem>>
    return
  }
}

</mosaic_0001>

<llo_original>
// kernel: chrominance_loss.1
$region0: #{chrominance_loss.1}
  #allocation0 [shape = 'u32[]', space=smem, size = 0x4, offset = 0x4, fixed_abs, tag = 'smem constant byte address 0x4 - core index']
  #allocation1 [shape = 'u32[144,128]{1,0:T(1,128)}', space=vmem, size = 0x12000, scoped, tag = 'internal scratch']
  %s0 = inlined_call_operand.vmem [shape: s32[1,2], index: 0, kind: input, shape index: {}]
  %s1 = inlined_call_operand.vmem [shape: s32[2,1], index: 1, kind: input, shape index: {}]
  %s2 = inlined_call_operand.vmem [shape: f32[2,2], index: 2, kind: input, shape index: {}]
  %s3 = inlined_call_operand.vmem [shape: f32[2,50], index: 3, kind: input, shape index: {}]
  %s4 = inlined_call_operand.vmem [shape: f32[2,216], index: 4, kind: input, shape index: {}]
  %s5 = inlined_call_operand.vmem [shape: f32[4], index: 5, kind: output, shape index: {}]
  %s6 = sld [smem:[#allocation0]]
  $region30: #{chrominance_loss.1} parent=0
    _
  %s8 = ssub.s32 1, %s6
  %s9 = scalar_select 0, %s8, %s6
  $region1: #{chrominance_loss.1} parent=0
    #allocation2 [shape = 'u8[512]{0}', space=smem, size = 0x200, scoped, tag = 'output window, operand 0, single buffered']
    #allocation3 [shape = 's32[1]{0}', space=sflag, size = 0x4, scoped, tag = 'scoped memory for chrominance_loss.1']
    %10 = vsyncpa [#allocation3], 0
    // Predicated region
    $region2: #{chrominance_loss.1} parent=1 // pred_check
      _
    $region3: #{chrominance_loss.1} parent=1 // pred_check_branch
      %12 = sbr.rel (0) target = $region5
    $region4: #{chrominance_loss.1} parent=1 // pred_region
      _
    $region5: #{chrominance_loss.1} parent=1 // pred_fallthru
      _
    // Predicated region
    $region6: #{chrominance_loss.1} parent=1 // pred_check
      _
    $region7: #{chrominance_loss.1} parent=1 // pred_check_branch
      %14 = sbr.rel (0) target = $region9
    $region8: #{chrominance_loss.1} parent=1 // pred_region
      _
    $region9: #{chrominance_loss.1} parent=1 // pred_fallthru
      _
    // Predicated region
    $region10: #{chrominance_loss.1} parent=1 // pred_check
      _
    $region11: #{chrominance_loss.1} parent=1 // pred_check_branch
      %16 = sbr.rel (0) target = $region13
    $region12: #{chrominance_loss.1} parent=1 // pred_region
      _
    $region13: #{chrominance_loss.1} parent=1 // pred_fallthru
      _
    // Predicated region
    $region14: #{chrominance_loss.1} parent=1 // pred_check
      _
    $region15: #{chrominance_loss.1} parent=1 // pred_check_branch
      %18 = sbr.rel (0) target = $region17
    $region16: #{chrominance_loss.1} parent=1 // pred_region
      _
    $region17: #{chrominance_loss.1} parent=1 // pred_fallthru
      _
    // Predicated region
    $region18: #{chrominance_loss.1} parent=1 // pred_check
      _
    $region19: #{chrominance_loss.1} parent=1 // pred_check_branch
      %20 = sbr.rel (0) target = $region21
    $region20: #{chrominance_loss.1} parent=1 // pred_region
      _
    $region21: #{chrominance_loss.1} parent=1 // pred_fallthru
      _
    %v21 = vld [vmem:[%s0] sm:$0x1]
    %v22 = vld [vmem:[%s1] sm:$0x3]
    %v23 = vld [vmem:[%s2] sm:$0x3]
    %v24 = vld [vmem:[%s3] sm:$0x3]
    %v25 = vld [vmem:[%s4] sm:$0xf]
    %v27 = vrot.slane %v23, 1
    %v29 = vmax.f32 %v23, %v27
    %v30 = vsub.f32 %v23, %v29
    %v31 = vmul.f32 %v30, 1.442695
    %v32 = vpow.pop %v31
    %v33 = vadd.f32 %v32, 0.0
    %v35 = vrot.slane %v29, 7
    %v37 = vsub.f32 %v23, %v35
    %v38 = vmul.f32 %v37, 1.442695
    %v39 = vpow.pop %v38
    %v41 = vrot.slane %v39, 1
    %v43 = vadd.f32 %v33, %v41
    %v44 = vlog2.pop %v43
    %v45 = vmul.f32 %v44, 0.6931472
    %v46 = vadd.f32 %v29, %v45
    %vm47 = vcmask 8192
    %v48 = vsel %vm47, %v46, 0.0
    %49 = vadd.xlane.f32.xlu0 %v48
    %v50 = vpop.xlane.xlu0 %49
    %v51 = vrot.slane %v50, 4
    %v52 = vadd.f32 %v50, %v51
    %v53 = vrot.slane %v52, 2
    %v54 = vadd.f32 %v52, %v53
    %v55 = vrot.slane %v54, 1
    %v56 = vadd.f32 %v54, %v55
    %s57 = vtos %v56
    %v58 = vlaneseq
    %v59 = vshrl.u32 %v58, 7
    %v60 = vlaneseq
    %v61 = vshrl.u32 %v60, 7
    %v62 = vsub.s32 0, %v61
    %v63 = vrot.slane %v21, %v62
    %vm64 = vcmp.eq.s32.totalorder %v59, %v63
    %v65 = vsel %vm64, %v23, 0.0
    %vm66 = vcmask 9216
    %v67 = vsel %vm66, %v65, 0.0
    %68 = vadd.xlane.f32.xlu0 %v67
    %v69 = vpop.xlane.xlu0 %68
    %v70 = vrot.slane %v69, 4
    %v71 = vadd.f32 %v69, %v70
    %v72 = vrot.slane %v71, 2
    %v73 = vadd.f32 %v71, %v72
    %v74 = vrot.slane %v73, 1
    %v75 = vadd.f32 %v73, %v74
    %s76 = vtos %v75
    %s77 = ssub.f32 %s57, %s76
    %v78 = vrcp.pop 2.0
    %s79 = vtos %v78
    %s80 = smul.f32 %s77, %s79
    %vm81 = vcmp.eq.s32.totalorder %v22, 0
    %v82 = vsel %vm81, 1, 0
    %v83 = vcvt.s32.f32 %v82
    %vm84 = vcmask 1024
    %v85 = vsel %vm84, %v83, 0.0
    %86 = vadd.xlane.f32.xlu0 %v85
    %v87 = vpop.xlane.xlu0 %86
    %v88 = vrot.slane %v87, 4
    %v89 = vadd.f32 %v87, %v88
    %v90 = vrot.slane %v89, 2
    %v91 = vadd.f32 %v89, %v90
    %v92 = vrot.slane %v91, 1
    %v93 = vadd.f32 %v91, %v92
    %s94 = vtos %v93
    %s95 = ssub.f32 2.0, %s94
    %vm96 = vcmp.eq.s32.totalorder %v21, 1
    %v97 = vsel %vm96, 1, 0
    %v98 = vcvt.s32.f32 %v97
    %v99 = vsel %vm47, %v98, 0.0
    %100 = vadd.xlane.f32.xlu0 %v99
    %v101 = vpop.xlane.xlu0 %100
    %v102 = vrot.slane %v101, 4
    %v103 = vadd.f32 %v101, %v102
    %v104 = vrot.slane %v103, 2
    %v105 = vadd.f32 %v103, %v104
    %v106 = vrot.slane %v105, 1
    %v107 = vadd.f32 %v105, %v106
    %s108 = vtos %v107
    %p109 = scmp.gt.f32.partialorder %s94, 0.0
    %p110 = scmp.gt.f32.partialorder %s108, 0.0
    %p111 = pnand %p109, %p110
    %p112 = pneg %p111
    %s113 = smax.f32 %s94, 1.0
    %v114 = vstv %s113
    %v115 = vrcp.pop %v114
    %s116 = vtos %v115
    %s117 = smax.f32 %s95, 1.0
    %v118 = vstv %s117
    %v119 = vrcp.pop %v118
    %s120 = vtos %v119
    %vm121 = vcmask 402432
    %v122 = vsel %vm121, %v24, 0.0
    %v123 = vrot.slane %v122, 4
    %v124 = vadd.f32 %v122, %v123
    %v125 = vrot.slane %v124, 2
    %v126 = vadd.f32 %v124, %v125
    %v127 = vrot.slane %v126, 1
    %v128 = vadd.f32 %v126, %v127
    %130 = vset.pattern.permute.xlu0 0
    %131 = vperm.xlu0 %130, %v83
    %v132 = vpop.permute.xlu0 %131
    %v134 = vmul.f32 %v24, %v132
    %v135 = vsel %vm121, %v134, 0.0
    %v136 = vrot.slane %v135, 4
    %v137 = vadd.f32 %v135, %v136
    %v138 = vrot.slane %v137, 2
    %v139 = vadd.f32 %v137, %v138
    %v140 = vrot.slane %v139, 1
    %v141 = vadd.f32 %v139, %v140
    %v142 = vsub.f32 %v128, %v141
    %v143 = vstv %s116
    %v144 = vmul.f32 %v141, %v143
    %v145 = vstv %s120
    %v146 = vmul.f32 %v142, %v145
    %v147 = vsub.f32 %v144, %v146
    %v148 = vmul.f32 %v147, %v147
    %vm149 = vcmask 401408
    %v150 = vsel %vm149, %v148, 0.0
    %151 = vadd.xlane.f32.xlu0 %v150
    %v152 = vpop.xlane.xlu0 %151
    %v153 = vrot.slane %v152, 4
    %v154 = vadd.f32 %v152, %v153
    %v155 = vrot.slane %v154, 2
    %v156 = vadd.f32 %v154, %v155
    %v157 = vrot.slane %v156, 1
    %v158 = vadd.f32 %v156, %v157
    %s159 = vtos %v158
    %v160 = vrcp.pop 50.0
    %s161 = vtos %v160
    %s162 = smul.f32 %s159, %s161
    %s163 = ssub.f32 0.0, %s162
    %s164 = scalar_select %p112, %s163, 0.0
    %v167 = vunpack.c.l.s4 1983009808
    %v168 = vunpack.c.0.s8 %v167
    %v169 = vlaneseq
    %v170 = vshrl.u32 %v169, 7
    %v171 = vsub.s32 %v168, %v170
    %v172 = vrot.slane %v25, %v171
    %v173 = vcombine.high %v172, %v172
    %vm176 = vcmask 1041408
    %v177 = vsel %vm176, %v172, 0.0
    %v178 = vrot.slane %v177, 4
    %v179 = vadd.f32 %v177, %v178
    %v180 = vrot.slane %v179, 2
    %v181 = vadd.f32 %v179, %v180
    %v182 = vrot.slane %v181, 1
    %v183 = vadd.f32 %v181, %v182
    %vm184 = vcmask 713728
    %v185 = vsel %vm184, %v173, 0.0
    %v186 = vrot.slane %v185, 4
    %v187 = vadd.f32 %v185, %v186
    %v188 = vrot.slane %v187, 2
    %v189 = vadd.f32 %v187, %v188
    %v190 = vrot.slane %v189, 1
    %v191 = vadd.f32 %v189, %v190
    %v193 = vunpack.c.l.s4 269488144
    %v194 = vunpack.c.0.s8 %v193
    %v195 = vlaneseq
    %v196 = vshrl.u32 %v195, 7
    %v197 = vsub.s32 %v194, %v196
    %v198 = vrot.slane %v132, %v197
    %v200 = vmul.f32 %v25, %v198
    %v203 = vunpack.c.l.s4 1983009808
    %v204 = vunpack.c.0.s8 %v203
    %v205 = vlaneseq
    %v206 = vshrl.u32 %v205, 7
    %v207 = vsub.s32 %v204, %v206
    %v208 = vrot.slane %v200, %v207
    %v209 = vcombine.high %v208, %v208
    %v212 = vsel %vm176, %v208, 0.0
    %v213 = vrot.slane %v212, 4
    %v214 = vadd.f32 %v212, %v213
    %v215 = vrot.slane %v214, 2
    %v216 = vadd.f32 %v214, %v215
    %v217 = vrot.slane %v216, 1
    %v218 = vadd.f32 %v216, %v217
    %v219 = vsel %vm184, %v209, 0.0
    %v220 = vrot.slane %v219, 4
    %v221 = vadd.f32 %v219, %v220
    %v222 = vrot.slane %v221, 2
    %v223 = vadd.f32 %v221, %v222
    %v224 = vrot.slane %v223, 1
    %v225 = vadd.f32 %v223, %v224
    %v226 = vsub.f32 %v183, %v218
    %v227 = vsub.f32 %v191, %v225
    %v228 = vmul.f32 %v218, %v143
    %v229 = vmul.f32 %v225, %v143
    %v230 = vmul.f32 %v226, %v145
    %v231 = vmul.f32 %v227, %v145
    %v232 = vsub.f32 %v228, %v230
    %v233 = vsub.f32 %v229, %v231
    %v234 = vmul.f32 %v232, %v232
    %v235 = vmul.f32 %v233, %v233
    %vm236 = vcmask 1040384
    %v237 = vsel %vm236, %v234, 0.0
    %vm238 = vcmask 712704
    %v239 = vsel %vm238, %v235, 0.0
    %v240 = vadd.f32 %v237, %v239
    %241 = vadd.xlane.f32.xlu0 %v240
    %v242 = vpop.xlane.xlu0 %241
    %v243 = vrot.slane %v242, 4
    %v244 = vadd.f32 %v242, %v243
    %v245 = vrot.slane %v244, 2
    %v246 = vadd.f32 %v244, %v245
    %v247 = vrot.slane %v246, 1
    %v248 = vadd.f32 %v246, %v247
    %s249 = vtos %v248
    %v250 = vrcp.pop 216.0
    %s251 = vtos %v250
    %s252 = smul.f32 %s249, %s251
    %s253 = ssub.f32 0.0, %s252
    %s254 = scalar_select %p112, %s253, 0.0
    %s255 = smul.f32 %s164, 0.05
    %s256 = sadd.f32 %s80, %s255
    %s257 = smul.f32 %s254, 0.02
    %s258 = sadd.f32 %s256, %s257
    %s259 = scalar_lea.smem [#allocation2], 0
    %260 = sst [smem:[%s259]] %s80
    %s261 = scalar_lea.smem [#allocation2], 1
    %262 = sst [smem:[%s261]] %s164
    %s263 = scalar_lea.smem [#allocation2], 2
    %264 = sst [smem:[%s263]] %s254
    %s265 = scalar_lea.smem [#allocation2], 3
    %266 = sst [smem:[%s265]] %s258
    // Predicated region
    $region22: #{chrominance_loss.1} parent=1 // pred_check
      _
    $region23: #{chrominance_loss.1} parent=1 // pred_check_branch
      %268 = sbr.rel (0) target = $region25
    $region24: #{chrominance_loss.1} parent=1 // pred_region
      %s270 = ssub.s32 16, 16
      %271 = vsyncadd [#allocation3], %s270
      %s273 = sshll.u32 %s5, 4
      %s274 = int_to_ptr.vmem [resolvable:$true] %s273
      %276 = dma.smem_to_vmem [#allocation2], 16, %s274, [#allocation3]
    $region25: #{chrominance_loss.1} parent=1 // pred_fallthru
      _
    // Predicated region
    $region26: #{chrominance_loss.1} parent=1 // pred_check
      _
    $region27: #{chrominance_loss.1} parent=1 // pred_check_branch
      %278 = sbr.rel (0) target = $region29
    $region28: #{chrominance_loss.1} parent=1 // pred_region
      %279 = dma.done [#allocation3], 16
    $region29: #{chrominance_loss.1} parent=1 // pred_fallthru
      _
    %280 = sfence
    %281 = vsyncpa [#allocation3], 1

</llo_original>
